<compile_context>
chip_gen: v5e
topology: v5e:2x2
jax: 0.10.0
libtpu: 0.0.40
codegen_flags: <defaults>
</compile_context>

<pallas_src>
import functools

import numpy as np
import jax
import jax.numpy as jnp
from jax import lax
from jax.experimental import pallas as pl
from jax.experimental.pallas import tpu as pltpu


# ----------------------------------------------------------------------------
# Pass 1: dilated 3x3 conv (bias-free) -> raw conv1 to HBM + per-batch BN stats
# ----------------------------------------------------------------------------

def _conv1_lane_dense(x_ref, w1_ref, mask_ref, xe_ref, col_ref, *,
                      rate, H, W, use_im2col):
    """Dilated 3x3 conv (pad=rate, dilation=rate, no bias) for one batch element.

    x_ref   : (1, Cin, H*W)          activation (channels=sublanes, spatial=lanes)
    w1_ref  : (C1, 9*Cin)            tap-major conv1 weights
    mask_ref: (9, H*W)               per-tap border-validity mask (1.0 / 0.0)
    xe_ref  : (Cin, H*W + 2*lpad)    scratch: lane-padded copy of the activation
    col_ref : (9*Cin, H*W) or None   scratch: im2col matrix (tiny-Cin path only)
    returns : (C1, H*W) float32      conv1 output (bias-free)
    """
    Cin = x_ref.shape[1]
    C1 = w1_ref.shape[0]
    HW = H * W
    lpad = (xe_ref.shape[1] - HW) // 2           # 128-aligned lane halo
    dt = xe_ref.dtype

    # Zero ONLY the halos (out-of-image taps must never read NaN garbage); the
    # middle is fully overwritten just below, so it is never zeroed.
    xe_ref[:, pl.ds(0, lpad)] = jnp.zeros((Cin, lpad), dt)
    xe_ref[:, pl.ds(lpad + HW, lpad)] = jnp.zeros((Cin, lpad), dt)
    xe_ref[:, pl.ds(lpad, HW)] = x_ref[0]

    if use_im2col:
        # Tiny Cin: one MXU matmul with K = 9*Cin instead of 9 starved K=Cin ones.
        for kh in range(3):
            for kw in range(3):
                tap = kh * 3 + kw
                shift = rate * ((kh - 1) * W + (kw - 1))       # flat tap offset
                shifted = xe_ref[:, pl.ds(lpad + shift, HW)]   # (Cin, HW)
                col_ref[pl.ds(tap * Cin, Cin), :] = (
                    shifted * mask_ref[pl.ds(tap, 1), :])
        return jnp.dot(w1_ref[...], col_ref[...],
                       preferred_element_type=jnp.float32)

    # Realistic Cin (>= 64): no im2col scratch at all — accumulate 9 matmuls into
    # an f32 accumulator (each tap already has a healthy K=Cin for the MXU).
    acc = jnp.zeros((C1, HW), jnp.float32)
    for kh in range(3):
        for kw in range(3):
            tap = kh * 3 + kw
            shift = rate * ((kh - 1) * W + (kw - 1))
            shifted = (xe_ref[:, pl.ds(lpad + shift, HW)]
                       * mask_ref[pl.ds(tap, 1), :])
            acc = acc + jnp.dot(w1_ref[:, pl.ds(tap * Cin, Cin)], shifted,
                                preferred_element_type=jnp.float32)
    return acc


def _conv1_stats_kernel(x_ref, w1_ref, mask_ref, h_ref, sum_ref, m2_ref,
                        *scratch, rate, H, W, use_im2col):
    if use_im2col:
        xe_ref, col_ref = scratch
    else:
        (xe_ref,) = scratch
        col_ref = None

    acc = _conv1_lane_dense(x_ref, w1_ref, mask_ref, xe_ref, col_ref,
                            rate=rate, H=H, W=W, use_im2col=use_im2col)
    h_ref[0] = acc.astype(h_ref.dtype)

    # Per-batch mean and centered sum-of-squares partials.  Combined across the
    # batch with Chan's parallel formula in the wrapper -> numerically robust
    # (no one-pass E[x^2]-E[x]^2 cancellation).
    HW = H * W
    s = jnp.sum(acc, axis=1, keepdims=True)                   # (C1, 1)
    mu = s * (1.0 / HW)
    d = acc - mu
    m2 = jnp.sum(d * d, axis=1, keepdims=True)                # (C1, 1)
    # Lane-dense (last dim 128) stores -> unmasked vst instead of vst.msk.
    sum_ref[0] = jnp.broadcast_to(s, sum_ref.shape[1:])
    m2_ref[0] = jnp.broadcast_to(m2, m2_ref.shape[1:])


# ----------------------------------------------------------------------------
# Pass 2: folded BatchNorm + 1x1 conv over the stored conv1 output
# ----------------------------------------------------------------------------

def _bn_conv2_kernel(h_ref, w2f_ref, bf_ref, out_ref):
    out = jnp.dot(w2f_ref[...], h_ref[0],
                  preferred_element_type=jnp.float32) + bf_ref[...]
    out_ref[0] = out.astype(out_ref.dtype)


# ----------------------------------------------------------------------------
# Host-side helpers
# ----------------------------------------------------------------------------

def _tap_masks(H, W, rate):
    """(9, H*W) validity masks for the 9 dilated taps (trace-time numpy)."""
    hh, ww = np.meshgrid(np.arange(H), np.arange(W), indexing="ij")
    rows = []
    for kh in range(3):
        for kw in range(3):
            dh, dw = (kh - 1) * rate, (kw - 1) * rate
            valid = ((hh + dh >= 0) & (hh + dh < H) &
                     (ww + dw >= 0) & (ww + dw < W))
            rows.append(valid.reshape(H * W))
    return np.stack(rows, axis=0).astype(np.float32)


def _pick_hw_tile(HW, cap=32768):
    """Largest multiple-of-128 divisor of HW not exceeding `cap` (or HW itself)."""
    if HW <= cap:
        return HW
    t = cap - cap % 128
    while t >= 128:
        if HW % t == 0:
            return t
        t -= 128
    return HW


def _vmem_limit(per_step_bytes):
    """Audited VMEM limit: enough for ~2.5x the per-step footprint, capped at 75%
    of the physical VMEM of the local chip (64 MiB v7x, 128 MiB v5e/v6e)."""
    try:
        phys = pltpu.get_tpu_info().vmem_capacity_bytes
    except Exception:
        phys = 64 * 1024 * 1024
    want = max(32 * 1024 * 1024, int(2.5 * per_step_bytes))
    return int(min(want, int(0.75 * phys)))


def atrous_module_forward(x_nchw, params, *, rate, eps=1e-5,
                          conv_dtype=jnp.float32):
    """params holds torch-shaped tensors: w1 (C1,Cin,3,3), b1 (C1,), gamma (C1,),
    beta (C1,), w2 (C2,C1,1,1), b2 (C2,).  `conv_dtype=jnp.bfloat16` is the
    recommended operand dtype on v6e/v7x for large channel counts."""
    w1, b1, gamma, beta, w2, b2 = (params[k] for k in
                                   ("w1", "b1", "gamma", "beta", "w2", "b2"))
    del b1  # conv1 bias cancels exactly through training-mode BatchNorm.

    N, Cin, H, W = x_nchw.shape
    C1 = w1.shape[0]
    C2 = w2.shape[0]
    HW = H * W
    halo = rate * W + rate
    lpad = max(128, ((halo + 127) // 128) * 128)   # 128-aligned lane halo
    use_im2col = Cin < 64                          # below this K=Cin starves the MXU
    esz = jnp.dtype(conv_dtype).itemsize

    # Layout prep: free reshape of NCHW (channels->sublanes, flat spatial->lanes)
    # plus tiny weight reshuffles.  No activation transpose, no HBM spatial pad.
    x_flat = x_nchw.reshape(N, Cin, HW).astype(conv_dtype)
    w1_k = jnp.transpose(w1, (0, 2, 3, 1)).reshape(C1, 9 * Cin).astype(conv_dtype)
    w2_2d = w2[:, :, 0, 0].astype(jnp.float32)                  # (C2, C1)
    masks = jnp.asarray(_tap_masks(H, W, rate)).astype(conv_dtype)

    # ---- pass 1: conv1 -> raw output to HBM + per-batch BN stat partials. ----
    scratch1 = [pltpu.VMEM((Cin, HW + 2 * lpad), conv_dtype)]
    if use_im2col:
        scratch1.append(pltpu.VMEM((9 * Cin, HW), conv_dtype))

    p1_bytes = (2 * (Cin * HW + C1 * 9 * Cin + 9 * HW + C1 * HW) * esz
                + 2 * 2 * C1 * 128 * 4
                + Cin * (HW + 2 * lpad) * esz
                + (9 * Cin * HW * esz if use_im2col else 0))

    h_raw, psum, pm2 = pl.pallas_call(
        functools.partial(_conv1_stats_kernel, rate=rate, H=H, W=W,
                          use_im2col=use_im2col),
        grid=(N,),
        in_specs=[
            pl.BlockSpec((1, Cin, HW), lambda n: (n, 0, 0)),
            pl.BlockSpec((C1, 9 * Cin), lambda n: (0, 0)),
            pl.BlockSpec((9, HW), lambda n: (0, 0)),
        ],
        out_specs=[
            pl.BlockSpec((1, C1, HW), lambda n: (n, 0, 0)),
            pl.BlockSpec((1, C1, 128), lambda n: (n, 0, 0)),
            pl.BlockSpec((1, C1, 128), lambda n: (n, 0, 0)),
        ],
        out_shape=[
            jax.ShapeDtypeStruct((N, C1, HW), conv_dtype),
            jax.ShapeDtypeStruct((N, C1, 128), jnp.float32),
            jax.ShapeDtypeStruct((N, C1, 128), jnp.float32),
        ],
        scratch_shapes=scratch1,
        compiler_params=pltpu.CompilerParams(
            dimension_semantics=("parallel",),
            vmem_limit_bytes=_vmem_limit(p1_bytes)),
    )(x_flat, w1_k, masks)

    # ---- cross-batch stats (Chan combine, O(N*C1)) + BN fold into 1x1 conv. ----
    mean_n = psum[:, :, 0] * (1.0 / HW)                      # (N, C1)
    mean = jnp.mean(mean_n, axis=0)                          # (C1,)
    m2 = (jnp.sum(pm2[:, :, 0], axis=0)
          + HW * jnp.sum((mean_n - mean[None, :]) ** 2, axis=0))
    var = m2 * (1.0 / (N * HW))                              # biased, as PyTorch BN
    s = gamma.astype(jnp.float32) * lax.rsqrt(var + eps)     # (C1,)
    w2f = (w2_2d * s[None, :]).astype(conv_dtype)            # (C2, C1)
    bias_f = (w2_2d @ (beta.astype(jnp.float32) - s * mean)
              + b2.astype(jnp.float32)).reshape(C2, 1)       # (C2, 1), f32

    # ---- pass 2: folded BN + 1x1 conv over the stored conv1 (no recompute). ----
    # 1x1 conv needs no halo, so tile the flattened spatial axis to bound the
    # per-step VMEM footprint and expose more parallel grid steps (v7x megacore).
    tHW = _pick_hw_tile(HW)
    p2_bytes = 2 * ((C1 * tHW + C2 * C1) * esz + C2 * 4 + C2 * tHW * 4)

    y_flat = pl.pallas_call(
        _bn_conv2_kernel,
        grid=(N, HW // tHW),
        in_specs=[
            pl.BlockSpec((1, C1, tHW), lambda n, t: (n, 0, t)),
            pl.BlockSpec((C2, C1), lambda n, t: (0, 0)),
            pl.BlockSpec((C2, 1), lambda n, t: (0, 0)),
        ],
        out_specs=pl.BlockSpec((1, C2, tHW), lambda n, t: (n, 0, t)),
        out_shape=jax.ShapeDtypeStruct((N, C2, HW), jnp.float32),
        compiler_params=pltpu.CompilerParams(
            dimension_semantics=("parallel", "parallel"),
            vmem_limit_bytes=_vmem_limit(p2_bytes)),
    )(h_raw, w2f, bias_f)

    # TODO(synk): for very large H*W on v7x, additionally row-block pass 1 with a
    # rate-row halo per block (manual-DMA halo fetch) so the (Cin, HW+2*lpad)
    # lane buffer and (C1, HW) output block stay within the 64 MiB VMEM budget.
    return y_flat.reshape(N, C2, H, W)


# ----------------------------------------------------------------------------
# Pure-JAX reference (PyTorch forward, training-mode BN) + smoke test
# ----------------------------------------------------------------------------

def _reference_forward(x_nchw, params, *, rate, eps=1e-5):
    w1, b1, gamma, beta, w2, b2 = (params[k] for k in
                                   ("w1", "b1", "gamma", "beta", "w2", "b2"))
    dn = lax.conv_dimension_numbers(x_nchw.shape, w1.shape,
                                    ("NCHW", "OIHW", "NCHW"))
    h = lax.conv_general_dilated(
        x_nchw, w1, window_strides=(1, 1),
        padding=((rate, rate), (rate, rate)),
        rhs_dilation=(rate, rate), dimension_numbers=dn)
    h = h + b1[None, :, None, None]
    mean = jnp.mean(h, axis=(0, 2, 3), keepdims=True)
    var = jnp.mean((h - mean) ** 2, axis=(0, 2, 3), keepdims=True)
    h = (h - mean) * lax.rsqrt(var + eps)
    h = h * gamma[None, :, None, None] + beta[None, :, None, None]
    out = lax.conv_general_dilated(
        h, w2, window_strides=(1, 1), padding=((0, 0), (0, 0)),
        dimension_numbers=lax.conv_dimension_numbers(h.shape, w2.shape,
                                                     ("NCHW", "OIHW", "NCHW")))
    return out + b2[None, :, None, None]


if __name__ == "__main__":
    # Shapes consistent with the module: inplanes=4, out_planes1=8, out_planes2=4,
    # rate=2, input x: (2, 4, 16, 16) NCHW.
    N, Cin, H, W = 2, 4, 16, 16
    C1, C2, rate = 8, 4, 2

    key = jax.random.PRNGKey(0)
    k_x, k_w1, k_b1, k_g, k_bt, k_w2, k_b2 = jax.random.split(key, 7)

    x = jax.random.normal(k_x, (N, Cin, H, W), dtype=jnp.float32)
    params = {
        "w1": 0.1 * jax.random.normal(k_w1, (C1, Cin, 3, 3), dtype=jnp.float32),
        "b1": 0.1 * jax.random.normal(k_b1, (C1,), dtype=jnp.float32),
        "gamma": 1.0 + 0.1 * jax.random.normal(k_g, (C1,), dtype=jnp.float32),
        "beta": 0.1 * jax.random.normal(k_bt, (C1,), dtype=jnp.float32),
        "w2": 0.1 * jax.random.normal(k_w2, (C2, C1, 1, 1), dtype=jnp.float32),
        "b2": 0.1 * jax.random.normal(k_b2, (C2,), dtype=jnp.float32),
    }

    forward = jax.jit(functools.partial(atrous_module_forward, rate=rate))
    out = jax.block_until_ready(forward(x, params))

    ref = jax.block_until_ready(_reference_forward(x, params, rate=rate))
    assert out.shape == (N, C2, H, W), out.shape
    np.testing.assert_allclose(np.asarray(out), np.asarray(ref),
                               rtol=1e-3, atol=1e-3)
    print("KERNEL_OK")
</pallas_src>

<mosaic_0001>
module attributes {stable_mosaic.version = 11 : i64} {
  func.func @_conv1_stats_kernel(%arg0: i32, %arg1: memref<1x4x256xf32, #tpu.memory_space<vmem>>, %arg2: memref<8x36xf32, #tpu.memory_space<vmem>>, %arg3: memref<9x256xf32, #tpu.memory_space<vmem>>, %arg4: memref<1x8x256xf32, #tpu.memory_space<vmem>>, %arg5: memref<1x8x128xf32, #tpu.memory_space<vmem>>, %arg6: memref<1x8x128xf32, #tpu.memory_space<vmem>>, %arg7: memref<4x512xf32, #tpu.memory_space<vmem>>, %arg8: memref<36x256xf32, #tpu.memory_space<vmem>>) attributes {dimension_semantics = [#tpu.dimension_semantics<parallel>], iteration_bounds = array<i64: 2>, scalar_prefetch = 0 : i64, scratch_operands = 2 : i64, tpu.core_type = #tpu.core_type<tc>, window_params = [{transform_indices = @transform_0, window_bounds = array<i64: 1, 4, 256>}, {pipeline_mode = #tpu.pipeline_mode<synchronous>, transform_indices = @transform_1, window_bounds = array<i64: 8, 36>}, {pipeline_mode = #tpu.pipeline_mode<synchronous>, transform_indices = @transform_2, window_bounds = array<i64: 9, 256>}, {transform_indices = @transform_3, window_bounds = array<i64: 1, 8, 256>}, {transform_indices = @transform_4, window_bounds = array<i64: 1, 8, 128>}, {transform_indices = @transform_5, window_bounds = array<i64: 1, 8, 128>}]} {
    %cst = arith.constant 0.000000e+00 : f32
    %0 = vector.broadcast %cst : f32 to vector<4x128xf32>
    %c0 = arith.constant 0 : index
    %c0_0 = arith.constant 0 : index
    %1 = vector.load %arg7[%c0, %c0_0] : memref<4x512xf32, #tpu.memory_space<vmem>>, vector<4x128xf32>
    tpu.vector_store %arg7[%c0, %c0_0], %0 {strides = array<i32>} : memref<4x512xf32, #tpu.memory_space<vmem>>, vector<4x128xf32>,
    %cst_1 = arith.constant 0.000000e+00 : f32
    %2 = vector.broadcast %cst_1 : f32 to vector<4x128xf32>
    %c0_2 = arith.constant 0 : index
    %c384 = arith.constant 384 : index
    %3 = vector.load %arg7[%c0_2, %c384] : memref<4x512xf32, #tpu.memory_space<vmem>>, vector<4x128xf32>
    tpu.vector_store %arg7[%c0_2, %c384], %2 {strides = array<i32>} : memref<4x512xf32, #tpu.memory_space<vmem>>, vector<4x128xf32>,
    %c0_3 = arith.constant 0 : index
    %c0_4 = arith.constant 0 : index
    %c0_5 = arith.constant 0 : index
    %4 = vector.load %arg1[%c0_3, %c0_4, %c0_5] : memref<1x4x256xf32, #tpu.memory_space<vmem>>, vector<1x4x256xf32>
    %5 = vector.shape_cast %4 : vector<1x4x256xf32> to vector<4x256xf32>
    %c0_6 = arith.constant 0 : index
    %c128 = arith.constant 128 : index
    %6 = vector.load %arg7[%c0_6, %c128] : memref<4x512xf32, #tpu.memory_space<vmem>>, vector<4x256xf32>
    tpu.vector_store %arg7[%c0_6, %c128], %5 {strides = array<i32>} : memref<4x512xf32, #tpu.memory_space<vmem>>, vector<4x256xf32>,
    %c0_7 = arith.constant 0 : index
    %c94 = arith.constant 94 : index
    %7 = vector.load %arg7[%c0_7, %c94] : memref<4x512xf32, #tpu.memory_space<vmem>>, vector<4x256xf32>
    %c0_8 = arith.constant 0 : index
    %c0_9 = arith.constant 0 : index
    %8 = vector.load %arg3[%c0_8, %c0_9] : memref<9x256xf32, #tpu.memory_space<vmem>>, vector<1x256xf32>
    %9 = vector.broadcast %8 : vector<1x256xf32> to vector<4x256xf32>
    %10 = arith.mulf %7, %9 : vector<4x256xf32>
    %c0_10 = arith.constant 0 : index
    %c0_11 = arith.constant 0 : index
    %11 = vector.load %arg8[%c0_10, %c0_11] : memref<36x256xf32, #tpu.memory_space<vmem>>, vector<4x256xf32>
    tpu.vector_store %arg8[%c0_10, %c0_11], %10 {strides = array<i32>} : memref<36x256xf32, #tpu.memory_space<vmem>>, vector<4x256xf32>,
    %c0_12 = arith.constant 0 : index
    %c96 = arith.constant 96 : index
    %12 = vector.load %arg7[%c0_12, %c96] : memref<4x512xf32, #tpu.memory_space<vmem>>, vector<4x256xf32>
    %c1 = arith.constant 1 : index
    %c0_13 = arith.constant 0 : index
    %13 = vector.load %arg3[%c1, %c0_13] : memref<9x256xf32, #tpu.memory_space<vmem>>, vector<1x256xf32>
    %14 = vector.broadcast %13 : vector<1x256xf32> to vector<4x256xf32>
    %15 = arith.mulf %12, %14 : vector<4x256xf32>
    %c4 = arith.constant 4 : index
    %c0_14 = arith.constant 0 : index
    %16 = vector.load %arg8[%c4, %c0_14] : memref<36x256xf32, #tpu.memory_space<vmem>>, vector<4x256xf32>
    tpu.vector_store %arg8[%c4, %c0_14], %15 {strides = array<i32>} : memref<36x256xf32, #tpu.memory_space<vmem>>, vector<4x256xf32>,
    %c0_15 = arith.constant 0 : index
    %c98 = arith.constant 98 : index
    %17 = vector.load %arg7[%c0_15, %c98] : memref<4x512xf32, #tpu.memory_space<vmem>>, vector<4x256xf32>
    %c2 = arith.constant 2 : index
    %c0_16 = arith.constant 0 : index
    %18 = vector.load %arg3[%c2, %c0_16] : memref<9x256xf32, #tpu.memory_space<vmem>>, vector<1x256xf32>
    %19 = vector.broadcast %18 : vector<1x256xf32> to vector<4x256xf32>
    %20 = arith.mulf %17, %19 : vector<4x256xf32>
    %c8 = arith.constant 8 : index
    %c0_17 = arith.constant 0 : index
    %21 = vector.load %arg8[%c8, %c0_17] : memref<36x256xf32, #tpu.memory_space<vmem>>, vector<4x256xf32>
    tpu.vector_store %arg8[%c8, %c0_17], %20 {strides = array<i32>} : memref<36x256xf32, #tpu.memory_space<vmem>>, vector<4x256xf32>,
    %c0_18 = arith.constant 0 : index
    %c126 = arith.constant 126 : index
    %22 = vector.load %arg7[%c0_18, %c126] : memref<4x512xf32, #tpu.memory_space<vmem>>, vector<4x256xf32>
    %c3 = arith.constant 3 : index
    %c0_19 = arith.constant 0 : index
    %23 = vector.load %arg3[%c3, %c0_19] : memref<9x256xf32, #tpu.memory_space<vmem>>, vector<1x256xf32>
    %24 = vector.broadcast %23 : vector<1x256xf32> to vector<4x256xf32>
    %25 = arith.mulf %22, %24 : vector<4x256xf32>
    %c12 = arith.constant 12 : index
    %c0_20 = arith.constant 0 : index
    %26 = vector.load %arg8[%c12, %c0_20] : memref<36x256xf32, #tpu.memory_space<vmem>>, vector<4x256xf32>
    tpu.vector_store %arg8[%c12, %c0_20], %25 {strides = array<i32>} : memref<36x256xf32, #tpu.memory_space<vmem>>, vector<4x256xf32>,
    %c0_21 = arith.constant 0 : index
    %c128_22 = arith.constant 128 : index
    %27 = vector.load %arg7[%c0_21, %c128_22] : memref<4x512xf32, #tpu.memory_space<vmem>>, vector<4x256xf32>
    %c4_23 = arith.constant 4 : index
    %c0_24 = arith.constant 0 : index
    %28 = vector.load %arg3[%c4_23, %c0_24] : memref<9x256xf32, #tpu.memory_space<vmem>>, vector<1x256xf32>
    %29 = vector.broadcast %28 : vector<1x256xf32> to vector<4x256xf32>
    %30 = arith.mulf %27, %29 : vector<4x256xf32>
    %c16 = arith.constant 16 : index
    %c0_25 = arith.constant 0 : index
    %31 = vector.load %arg8[%c16, %c0_25] : memref<36x256xf32, #tpu.memory_space<vmem>>, vector<4x256xf32>
    tpu.vector_store %arg8[%c16, %c0_25], %30 {strides = array<i32>} : memref<36x256xf32, #tpu.memory_space<vmem>>, vector<4x256xf32>,
    %c0_26 = arith.constant 0 : index
    %c130 = arith.constant 130 : index
    %32 = vector.load %arg7[%c0_26, %c130] : memref<4x512xf32, #tpu.memory_space<vmem>>, vector<4x256xf32>
    %c5 = arith.constant 5 : index
    %c0_27 = arith.constant 0 : index
    %33 = vector.load %arg3[%c5, %c0_27] : memref<9x256xf32, #tpu.memory_space<vmem>>, vector<1x256xf32>
    %34 = vector.broadcast %33 : vector<1x256xf32> to vector<4x256xf32>
    %35 = arith.mulf %32, %34 : vector<4x256xf32>
    %c20 = arith.constant 20 : index
    %c0_28 = arith.constant 0 : index
    %36 = vector.load %arg8[%c20, %c0_28] : memref<36x256xf32, #tpu.memory_space<vmem>>, vector<4x256xf32>
    tpu.vector_store %arg8[%c20, %c0_28], %35 {strides = array<i32>} : memref<36x256xf32, #tpu.memory_space<vmem>>, vector<4x256xf32>,
    %c0_29 = arith.constant 0 : index
    %c158 = arith.constant 158 : index
    %37 = vector.load %arg7[%c0_29, %c158] : memref<4x512xf32, #tpu.memory_space<vmem>>, vector<4x256xf32>
    %c6 = arith.constant 6 : index
    %c0_30 = arith.constant 0 : index
    %38 = vector.load %arg3[%c6, %c0_30] : memref<9x256xf32, #tpu.memory_space<vmem>>, vector<1x256xf32>
    %39 = vector.broadcast %38 : vector<1x256xf32> to vector<4x256xf32>
    %40 = arith.mulf %37, %39 : vector<4x256xf32>
    %c24 = arith.constant 24 : index
    %c0_31 = arith.constant 0 : index
    %41 = vector.load %arg8[%c24, %c0_31] : memref<36x256xf32, #tpu.memory_space<vmem>>, vector<4x256xf32>
    tpu.vector_store %arg8[%c24, %c0_31], %40 {strides = array<i32>} : memref<36x256xf32, #tpu.memory_space<vmem>>, vector<4x256xf32>,
    %c0_32 = arith.constant 0 : index
    %c160 = arith.constant 160 : index
    %42 = vector.load %arg7[%c0_32, %c160] : memref<4x512xf32, #tpu.memory_space<vmem>>, vector<4x256xf32>
    %c7 = arith.constant 7 : index
    %c0_33 = arith.constant 0 : index
    %43 = vector.load %arg3[%c7, %c0_33] : memref<9x256xf32, #tpu.memory_space<vmem>>, vector<1x256xf32>
    %44 = vector.broadcast %43 : vector<1x256xf32> to vector<4x256xf32>
    %45 = arith.mulf %42, %44 : vector<4x256xf32>
    %c28 = arith.constant 28 : index
    %c0_34 = arith.constant 0 : index
    %46 = vector.load %arg8[%c28, %c0_34] : memref<36x256xf32, #tpu.memory_space<vmem>>, vector<4x256xf32>
    tpu.vector_store %arg8[%c28, %c0_34], %45 {strides = array<i32>} : memref<36x256xf32, #tpu.memory_space<vmem>>, vector<4x256xf32>,
    %c0_35 = arith.constant 0 : index
    %c162 = arith.constant 162 : index
    %47 = vector.load %arg7[%c0_35, %c162] : memref<4x512xf32, #tpu.memory_space<vmem>>, vector<4x256xf32>
    %c8_36 = arith.constant 8 : index
    %c0_37 = arith.constant 0 : index
    %48 = vector.load %arg3[%c8_36, %c0_37] : memref<9x256xf32, #tpu.memory_space<vmem>>, vector<1x256xf32>
    %49 = vector.broadcast %48 : vector<1x256xf32> to vector<4x256xf32>
    %50 = arith.mulf %47, %49 : vector<4x256xf32>
    %c32 = arith.constant 32 : index
    %c0_38 = arith.constant 0 : index
    %51 = vector.load %arg8[%c32, %c0_38] : memref<36x256xf32, #tpu.memory_space<vmem>>, vector<4x256xf32>
    tpu.vector_store %arg8[%c32, %c0_38], %50 {strides = array<i32>} : memref<36x256xf32, #tpu.memory_space<vmem>>, vector<4x256xf32>,
    %c0_39 = arith.constant 0 : index
    %c0_40 = arith.constant 0 : index
    %52 = vector.load %arg2[%c0_39, %c0_40] : memref<8x36xf32, #tpu.memory_space<vmem>>, vector<8x36xf32>
    %c0_41 = arith.constant 0 : index
    %c0_42 = arith.constant 0 : index
    %53 = vector.load %arg8[%c0_41, %c0_42] : memref<36x256xf32, #tpu.memory_space<vmem>>, vector<36x256xf32>
    %cst_43 = arith.constant dense<0.000000e+00> : vector<8x256xf32>
    %54 = tpu.matmul %52, %53, %cst_43 {dimension_numbers = #tpu.dot_dimension_numbers<[1], [0], [0], [1], [0, 0, 1, 1], [], []>} : vector<8x36xf32>, vector<36x256xf32>, vector<8x256xf32> -> vector<8x256xf32>
    %c0_44 = arith.constant 0 : index
    %c0_45 = arith.constant 0 : index
    %c0_46 = arith.constant 0 : index
    %55 = vector.load %arg4[%c0_44, %c0_45, %c0_46] : memref<1x8x256xf32, #tpu.memory_space<vmem>>, vector<1x8x256xf32>
    %56 = vector.shape_cast %55 : vector<1x8x256xf32> to vector<8x256xf32>
    %57 = vector.shape_cast %54 : vector<8x256xf32> to vector<1x8x256xf32>
    tpu.vector_store %arg4[%c0_44, %c0_45, %c0_46], %57 {strides = array<i32>} : memref<1x8x256xf32, #tpu.memory_space<vmem>>, vector<1x8x256xf32>,
    %cst_47 = arith.constant dense<0.000000e+00> : vector<8xf32>
    %58 = vector.multi_reduction <add>, %54, %cst_47 [1] : vector<8x256xf32> to vector<8xf32>
    %59 = vector.shape_cast %58 : vector<8xf32> to vector<8x1xf32>
    %cst_48 = arith.constant 3.906250e-03 : f32
    %60 = vector.broadcast %cst_48 : f32 to vector<8x1xf32>
    %61 = arith.mulf %59, %60 : vector<8x1xf32>
    %62 = vector.broadcast %61 : vector<8x1xf32> to vector<8x256xf32>
    %63 = arith.subf %54, %62 : vector<8x256xf32>
    %64 = arith.mulf %63, %63 : vector<8x256xf32>
    %cst_49 = arith.constant dense<0.000000e+00> : vector<8xf32>
    %65 = vector.multi_reduction <add>, %64, %cst_49 [1] : vector<8x256xf32> to vector<8xf32>
    %66 = vector.shape_cast %65 : vector<8xf32> to vector<8x1xf32>
    %67 = vector.shape_cast %59 : vector<8x1xf32> to vector<8x1xf32>
    %68 = vector.broadcast %67 : vector<8x1xf32> to vector<8x128xf32>
    %c0_50 = arith.constant 0 : index
    %c0_51 = arith.constant 0 : index
    %c0_52 = arith.constant 0 : index
    %69 = vector.load %arg5[%c0_50, %c0_51, %c0_52] : memref<1x8x128xf32, #tpu.memory_space<vmem>>, vector<1x8x128xf32>
    %70 = vector.shape_cast %69 : vector<1x8x128xf32> to vector<8x128xf32>
    %71 = vector.shape_cast %68 : vector<8x128xf32> to vector<1x8x128xf32>
    tpu.vector_store %arg5[%c0_50, %c0_51, %c0_52], %71 {strides = array<i32>} : memref<1x8x128xf32, #tpu.memory_space<vmem>>, vector<1x8x128xf32>,
    %72 = vector.shape_cast %66 : vector<8x1xf32> to vector<8x1xf32>
    %73 = vector.broadcast %72 : vector<8x1xf32> to vector<8x128xf32>
    %c0_53 = arith.constant 0 : index
    %c0_54 = arith.constant 0 : index
    %c0_55 = arith.constant 0 : index
    %74 = vector.load %arg6[%c0_53, %c0_54, %c0_55] : memref<1x8x128xf32, #tpu.memory_space<vmem>>, vector<1x8x128xf32>
    %75 = vector.shape_cast %74 : vector<1x8x128xf32> to vector<8x128xf32>
    %76 = vector.shape_cast %73 : vector<8x128xf32> to vector<1x8x128xf32>
    tpu.vector_store %arg6[%c0_53, %c0_54, %c0_55], %76 {strides = array<i32>} : memref<1x8x128xf32, #tpu.memory_space<vmem>>, vector<1x8x128xf32>,
    return
  }
  func.func @transform_0(%arg0: i32) -> (i32, i32, i32) {
    %c0_i32 = arith.constant 0 : i32
    %c0_i32_0 = arith.constant 0 : i32
    %c0_i32_1 = arith.constant 0 : i32
    return %arg0, %c0_i32, %c0_i32_0 : i32, i32, i32
  }
  func.func @transform_1(%arg0: i32) -> (i32, i32) {
    %c0_i32 = arith.constant 0 : i32
    %c0_i32_0 = arith.constant 0 : i32
    %c0_i32_1 = arith.constant 0 : i32
    return %c0_i32, %c0_i32_0 : i32, i32
  }
  func.func @transform_2(%arg0: i32) -> (i32, i32) {
    %c0_i32 = arith.constant 0 : i32
    %c0_i32_0 = arith.constant 0 : i32
    %c0_i32_1 = arith.constant 0 : i32
    return %c0_i32, %c0_i32_0 : i32, i32
  }
  func.func @transform_3(%arg0: i32) -> (i32, i32, i32) {
    %c0_i32 = arith.constant 0 : i32
    %c0_i32_0 = arith.constant 0 : i32
    %c0_i32_1 = arith.constant 0 : i32
    return %arg0, %c0_i32, %c0_i32_0 : i32, i32, i32
  }
  func.func @transform_4(%arg0: i32) -> (i32, i32, i32) {
    %c0_i32 = arith.constant 0 : i32
    %c0_i32_0 = arith.constant 0 : i32
    %c0_i32_1 = arith.constant 0 : i32
    return %arg0, %c0_i32, %c0_i32_0 : i32, i32, i32
  }
  func.func @transform_5(%arg0: i32) -> (i32, i32, i32) {
    %c0_i32 = arith.constant 0 : i32
    %c0_i32_0 = arith.constant 0 : i32
    %c0_i32_1 = arith.constant 0 : i32
    return %arg0, %c0_i32, %c0_i32_0 : i32, i32, i32
  }
}

module attributes {stable_mosaic.version = 11 : i64} {
  func.func @_bn_conv2_kernel(%arg0: i32, %arg1: i32, %arg2: memref<1x8x256xf32, #tpu.memory_space<vmem>>, %arg3: memref<4x8xf32, #tpu.memory_space<vmem>>, %arg4: memref<4x1xf32, #tpu.memory_space<vmem>>, %arg5: memref<1x4x256xf32, #tpu.memory_space<vmem>>) attributes {dimension_semantics = [#tpu.dimension_semantics<parallel>, #tpu.dimension_semantics<parallel>], iteration_bounds = array<i64: 2, 1>, scalar_prefetch = 0 : i64, scratch_operands = 0 : i64, tpu.core_type = #tpu.core_type<tc>, window_params = [{transform_indices = @transform_0, window_bounds = array<i64: 1, 8, 256>}, {pipeline_mode = #tpu.pipeline_mode<synchronous>, transform_indices = @transform_1, window_bounds = array<i64: 4, 8>}, {pipeline_mode = #tpu.pipeline_mode<synchronous>, transform_indices = @transform_2, window_bounds = array<i64: 4, 1>}, {transform_indices = @transform_3, window_bounds = array<i64: 1, 4, 256>}]} {
    %c0 = arith.constant 0 : index
    %c0_0 = arith.constant 0 : index
    %0 = vector.load %arg3[%c0, %c0_0] : memref<4x8xf32, #tpu.memory_space<vmem>>, vector<4x8xf32>
    %c0_1 = arith.constant 0 : index
    %c0_2 = arith.constant 0 : index
    %c0_3 = arith.constant 0 : index
    %1 = vector.load %arg2[%c0_1, %c0_2, %c0_3] : memref<1x8x256xf32, #tpu.memory_space<vmem>>, vector<1x8x256xf32>
    %2 = vector.shape_cast %1 : vector<1x8x256xf32> to vector<8x256xf32>
    %cst = arith.constant dense<0.000000e+00> : vector<4x256xf32>
    %3 = tpu.matmul %0, %2, %cst {dimension_numbers = #tpu.dot_dimension_numbers<[1], [0], [0], [1], [0, 0, 1, 1], [], []>} : vector<4x8xf32>, vector<8x256xf32>, vector<4x256xf32> -> vector<4x256xf32>
    %c0_4 = arith.constant 0 : index
    %c0_5 = arith.constant 0 : index
    %4 = vector.load %arg4[%c0_4, %c0_5] : memref<4x1xf32, #tpu.memory_space<vmem>>, vector<4x1xf32>
    %5 = vector.broadcast %4 : vector<4x1xf32> to vector<4x256xf32>
    %6 = arith.addf %3, %5 : vector<4x256xf32>
    %c0_6 = arith.constant 0 : index
    %c0_7 = arith.constant 0 : index
    %c0_8 = arith.constant 0 : index
    %7 = vector.load %arg5[%c0_6, %c0_7, %c0_8] : memref<1x4x256xf32, #tpu.memory_space<vmem>>, vector<1x4x256xf32>
    %8 = vector.shape_cast %7 : vector<1x4x256xf32> to vector<4x256xf32>
    %9 = vector.shape_cast %6 : vector<4x256xf32> to vector<1x4x256xf32>
    tpu.vector_store %arg5[%c0_6, %c0_7, %c0_8], %9 {strides = array<i32>} : memref<1x4x256xf32, #tpu.memory_space<vmem>>, vector<1x4x256xf32>,
    return
  }
  func.func @transform_0(%arg0: i32, %arg1: i32) -> (i32, i32, i32) {
    %c0_i32 = arith.constant 0 : i32
    %c0_i32_0 = arith.constant 0 : i32
    return %arg0, %c0_i32, %arg1 : i32, i32, i32
  }
  func.func @transform_1(%arg0: i32, %arg1: i32) -> (i32, i32) {
    %c0_i32 = arith.constant 0 : i32
    %c0_i32_0 = arith.constant 0 : i32
    %c0_i32_1 = arith.constant 0 : i32
    return %c0_i32, %c0_i32_0 : i32, i32
  }
  func.func @transform_2(%arg0: i32, %arg1: i32) -> (i32, i32) {
    %c0_i32 = arith.constant 0 : i32
    %c0_i32_0 = arith.constant 0 : i32
    %c0_i32_1 = arith.constant 0 : i32
    return %c0_i32, %c0_i32_0 : i32, i32
  }
  func.func @transform_3(%arg0: i32, %arg1: i32) -> (i32, i32, i32) {
    %c0_i32 = arith.constant 0 : i32
    %c0_i32_0 = arith.constant 0 : i32
    return %arg0, %c0_i32, %arg1 : i32, i32, i32
  }
}

</mosaic_0001>

<llo_original>
// kernel: atrous_module_forward.3
$region0: #{atrous_module_forward.3}
  #allocation0 [shape = 'u32[]', space=smem, size = 0x4, offset = 0x4, fixed_abs, tag = 'smem constant byte address 0x4 - core index']
  #allocation1 [shape = 'u32[72,128]{1,0:T(1,128)}', space=vmem, size = 0x9000, scoped, tag = 'internal scratch']
  %s0 = inlined_call_operand.vmem [shape: f32[2,8,256], index: 0, kind: input, shape index: {}]
  %s1 = inlined_call_operand.vmem [shape: f32[4,8], index: 1, kind: input, shape index: {}]
  %s2 = inlined_call_operand.vmem [shape: f32[4,1], index: 2, kind: input, shape index: {}]
  %s3 = inlined_call_operand.vmem [shape: f32[2,4,256], index: 3, kind: output, shape index: {}]
  %s4 = sld [smem:[#allocation0]]
  $region45: #{atrous_module_forward.3} parent=0
    _
  %s6 = ssub.s32 1, %s4
  %s7 = scalar_select 0, %s6, %s4
  loop: start=0, step=1, limit=4
  $region2: #{atrous_module_forward.3} parent=0 // loop_pre_header
    _
  $region3: #{atrous_module_forward.3} parent=0 // loop_header
    %s9 = sphi 0, %s13
    %p10 = scmp.ge.s32.totalorder %s9, 4
    %s16 = sphi 0, %s28
    %s17 = sphi 0, %s24
    %s18 = sphi 0, %s16
    %s19 = sphi 0, %s17
    %s20 = sphi 0, %s18
    %s21 = sphi 0, %s19
    %s33 = sphi 0, %s35
    %s36 = sphi 0, %s33
    %s37 = sphi 0, %s36
    %s53 = sphi 0, %s37
    %s57 = sphi 0, %s57
    %s59 = sphi 0, %s57
    %s60 = sphi 0, %s59
    %s74 = sphi 0, %s60
    %s78 = sphi 0, %s78
    %s80 = sphi 0, %s78
    %s81 = sphi 0, %s80
    %s95 = sphi 0, %s81
    %s103 = sphi 0, %s105
    %s106 = sphi 0, %s103
    %s107 = sphi 0, %s106
    %s123 = sphi 0, %s107
  $region4: #{atrous_module_forward.3} parent=0 // loop_header_branch
    %12 = sbr.rel (%p10) target = $region8
  $region5: #{atrous_module_forward.3} parent=0 // loop_body
    %s14 = ssub.s32 %s9, 1
    %s15 = ssub.s32 %s9, 2
    %s22 = sadd.s32 1, %s17
    %p23 = scmp.ge.s32.totalorder %s22, 1
    %s24 = scalar_select %p23, 0, %s22
    %s25 = sadd.s32 1, %s16
    %s26 = scalar_select %p23, %s25, %s16
    %p27 = scmp.ge.s32.totalorder %s26, 2
    %s28 = scalar_select %p27, 0, %s26
    %s29 = ssub.s32 %s16, %s28
    %s30 = ssub.s32 %s17, %s24
    %s31 = sor.u32 %s29, %s30
    %p32 = scmp.eq.s32.totalorder %s31, 0
    %s34 = sadd.s32 %s33, 1
    %s35 = scalar_select %p32, %s33, %s34
    %p38 = pneg %p32
    %p39 = scmp.eq.s32.totalorder %s9, 1
    %p40 = por %p38, %p39
    %p41 = scmp.ne.s32.totalorder %s33, %s36
    %p42 = scmp.eq.s32.totalorder %s9, 0
    %p43 = por %p41, %p42
    %p44 = scmp.ne.s32.totalorder %s33, %s36
    %p45 = scmp.eq.s32.totalorder %s14, 1
    %p46 = por %p44, %p45
    %p47 = scmp.ne.s32.totalorder %s36, %s37
    %p48 = scmp.eq.s32.totalorder %s14, 0
    %p49 = por %p47, %p48
    %p50 = scmp.ne.s32.totalorder %s36, %s37
    %p51 = scmp.eq.s32.totalorder %s15, 1
    %p52 = por %p50, %p51
    %p54 = scmp.ne.s32.totalorder %s37, %s53
    %p55 = scmp.eq.s32.totalorder %s15, 0
    %p56 = por %p54, %p55
    %s58 = sadd.s32 %s57, 1
    %p61 = scmp.eq.s32.totalorder %s9, 1
    %p62 = scmp.ne.s32.totalorder %s57, %s59
    %p63 = scmp.eq.s32.totalorder %s9, 0
    %p64 = por %p62, %p63
    %p65 = scmp.ne.s32.totalorder %s57, %s59
    %p66 = scmp.eq.s32.totalorder %s14, 1
    %p67 = por %p65, %p66
    %p68 = scmp.ne.s32.totalorder %s59, %s60
    %p69 = scmp.eq.s32.totalorder %s14, 0
    %p70 = por %p68, %p69
    %p71 = scmp.ne.s32.totalorder %s59, %s60
    %p72 = scmp.eq.s32.totalorder %s15, 1
    %p73 = por %p71, %p72
    %p75 = scmp.ne.s32.totalorder %s60, %s74
    %p76 = scmp.eq.s32.totalorder %s15, 0
    %p77 = por %p75, %p76
    %s79 = sadd.s32 %s78, 1
    %p82 = scmp.eq.s32.totalorder %s9, 1
    %p83 = scmp.ne.s32.totalorder %s78, %s80
    %p84 = scmp.eq.s32.totalorder %s9, 0
    %p85 = por %p83, %p84
    %p86 = scmp.ne.s32.totalorder %s78, %s80
    %p87 = scmp.eq.s32.totalorder %s14, 1
    %p88 = por %p86, %p87
    %p89 = scmp.ne.s32.totalorder %s80, %s81
    %p90 = scmp.eq.s32.totalorder %s14, 0
    %p91 = por %p89, %p90
    %p92 = scmp.ne.s32.totalorder %s80, %s81
    %p93 = scmp.eq.s32.totalorder %s15, 1
    %p94 = por %p92, %p93
    %p96 = scmp.ne.s32.totalorder %s81, %s95
    %p97 = scmp.eq.s32.totalorder %s15, 0
    %p98 = por %p96, %p97
    %s99 = ssub.s32 %s16, %s28
    %s100 = ssub.s32 %s17, %s24
    %s101 = sor.u32 %s99, %s100
    %p102 = scmp.eq.s32.totalorder %s101, 0
    %s104 = sadd.s32 %s103, 1
    %s105 = scalar_select %p102, %s103, %s104
    %p108 = pneg %p102
    %p109 = scmp.eq.s32.totalorder %s9, 1
    %p110 = por %p108, %p109
    %p111 = scmp.ne.s32.totalorder %s103, %s106
    %p112 = scmp.eq.s32.totalorder %s9, 0
    %p113 = por %p111, %p112
    %p114 = scmp.ne.s32.totalorder %s103, %s106
    %p115 = scmp.eq.s32.totalorder %s14, 1
    %p116 = por %p114, %p115
    %p117 = scmp.ne.s32.totalorder %s106, %s107
    %p118 = scmp.eq.s32.totalorder %s14, 0
    %p119 = por %p117, %p118
    %p120 = scmp.ne.s32.totalorder %s106, %s107
    %p121 = scmp.eq.s32.totalorder %s15, 1
    %p122 = por %p120, %p121
    %p124 = scmp.ne.s32.totalorder %s107, %s123
    %p125 = scmp.eq.s32.totalorder %s15, 0
    %p126 = por %p124, %p125
    %p127 = scmp.le.s32.totalorder 1, %s9
    %p128 = scmp.lt.s32.totalorder %s9, 3
    %p129 = pnand %p127, %p128
    %p130 = pneg %p129
    // Predicated region
    $region9: #{atrous_module_forward.3} parent=5 // pred_check
      _
    $region10: #{atrous_module_forward.3} parent=5 // pred_check_branch
      %132 = sbr.rel (%p129) target = $region12
    $region11: #{atrous_module_forward.3} parent=5 // pred_region
      %s133 = ssub.s32 %s9, 1
      // Predicated region
      $region13: #{atrous_module_forward.3} parent=11 // pred_check
        %p134 = pneg %p70
      $region14: #{atrous_module_forward.3} parent=11 // pred_check_branch
        %136 = sbr.rel (%p134) target = $region16
      $region15: #{atrous_module_forward.3} parent=11 // pred_region
        _
      $region16: #{atrous_module_forward.3} parent=11 // pred_fallthru
        _
      // Predicated region
      $region17: #{atrous_module_forward.3} parent=11 // pred_check
        %p137 = pneg %p91
      $region18: #{atrous_module_forward.3} parent=11 // pred_check_branch
        %139 = sbr.rel (%p137) target = $region20
      $region19: #{atrous_module_forward.3} parent=11 // pred_region
        _
      $region20: #{atrous_module_forward.3} parent=11 // pred_fallthru
        _
    $region12: #{atrous_module_forward.3} parent=5 // pred_fallthru
      _
    %p140 = scmp.lt.s32.totalorder %s9, 2
    // Predicated region
    $region21: #{atrous_module_forward.3} parent=5 // pred_check
      %p141 = pneg %p140
    $region22: #{atrous_module_forward.3} parent=5 // pred_check_branch
      %143 = sbr.rel (%p141) target = $region24
    $region23: #{atrous_module_forward.3} parent=5 // pred_region
      // Predicated region
      $region25: #{atrous_module_forward.3} parent=23 // pred_check
        %p144 = pneg %p43
      $region26: #{atrous_module_forward.3} parent=23 // pred_check_branch
        %146 = sbr.rel (%p144) target = $region28
      $region27: #{atrous_module_forward.3} parent=23 // pred_region
        %s147 = smul.u32 2, %s17
        %p148 = scmp.lt.s32.totalorder %s16, 1
        %s149 = scalar_select %p148, %s16, 1
        %p150 = scmp.lt.s32.totalorder %s147, 1
        %s151 = scalar_select %p150, %s147, 1
        %s152 = smul.addr %s149, 2
        %s153 = sadd.s32 %s151, %s152
        %s154 = smul.addr %s153, 8
        %s155 = scalar_lea.vmem %s0, %s154
        %s156 = smul.u32 2, %s17
      $region28: #{atrous_module_forward.3} parent=23 // pred_fallthru
        _
    $region24: #{atrous_module_forward.3} parent=5 // pred_fallthru
      _
    %p157 = scmp.le.s32.totalorder 1, %s9
    %p158 = scmp.lt.s32.totalorder %s9, 3
    %p159 = pnand %p157, %p158
    %p160 = pneg %p159
    // Predicated region
    $region29: #{atrous_module_forward.3} parent=5 // pred_check
      _
    $region30: #{atrous_module_forward.3} parent=5 // pred_check_branch
      %162 = sbr.rel (%p159) target = $region32
    $region31: #{atrous_module_forward.3} parent=5 // pred_region
      %s163 = ssub.s32 %s9, 1
      %s164 = smul.u32 2, %s19
      %p165 = scmp.lt.s32.totalorder %s18, 1
      %s166 = scalar_select %p165, %s18, 1
      %p167 = scmp.lt.s32.totalorder %s164, 1
      %s168 = scalar_select %p167, %s164, 1
      %s169 = smul.addr %s166, 2
      %s170 = sadd.s32 %s168, %s169
      %s171 = smul.addr %s170, 8
      %s172 = scalar_lea.vmem %s0, %s171
      %p173 = pneg %p49
      %p174 = pneg %p46
      %p175 = pneg %p70
      %p176 = pneg %p67
      %p177 = pneg %p91
      %p178 = pneg %p88
      %p179 = pneg %p119
      %p180 = pneg %p116
      %s181 = smul.u32 2, %s19
      %p182 = scmp.lt.s32.totalorder %s18, 1
      %s183 = scalar_select %p182, %s18, 1
      %p184 = scmp.lt.s32.totalorder %s181, 1
      %s185 = scalar_select %p184, %s181, 1
      %s186 = smul.addr %s183, 2
      %s187 = sadd.s32 %s185, %s186
      %s188 = smul.addr %s187, 4
      %s189 = scalar_lea.vmem %s3, %s188
      %s190 = smul.u32 2, %s19
      %p191 = scmp.lt.s32.totalorder %s18, 1
      %s192 = scalar_select %p191, %s18, 1
      %p193 = scmp.lt.s32.totalorder %s190, 1
      %s194 = scalar_select %p193, %s190, 1
      %s195 = smul.addr %s192, 2
      %s196 = sadd.s32 %s194, %s195
      %s197 = smul.addr %s196, 8
      %s198 = scalar_lea.vmem %s0, %s197
      %s199 = smul.u32 2, %s19
      %s200 = smul.u32 2, %s19
      %p201 = scmp.lt.s32.totalorder %s18, 1
      %s202 = scalar_select %p201, %s18, 1
      %p203 = scmp.lt.s32.totalorder %s200, 1
      %s204 = scalar_select %p203, %s200, 1
      %s205 = smul.addr %s202, 2
      %s206 = sadd.s32 %s204, %s205
      %s207 = smul.addr %s206, 4
      %s208 = scalar_lea.vmem %s3, %s207
      %s209 = smul.u32 2, %s19
      %v210 = vld [vmem:[%s1] sm:$0xf]
      %v211 = vld [vmem:[%s198] sm:$0xff]
      %v212 = vld [vmem:[%s198 + $0x8] sm:$0xff]
      %v213 = vld [vmem:[%s2] sm:$0xf]
      %215 = vset.pattern.permute.xlu0 0
      %216 = vperm.xlu0 %215, %v213
      %v217 = vpop.permute.xlu0 %216
      %vm219 = vcmask 64512
      %v221 = vsel %vm219, %v210, 0
      %223 = vmatpush.msra.mxu0 0.0
      %224 = vmatpush.msra.mxu0 0.0
      %225 = vmatpush.msra.mxu0 0.0
      %226 = vmatpush.msra.mxu0 0.0
      %227 = vmatpush.msra.mxu0 0.0
      %228 = vmatpush.msra.mxu0 0.0
      %229 = vmatpush.msra.mxu0 0.0
      %230 = vmatpush.msra.mxu0 0.0
      %231 = vmatpush.msra.mxu0 0.0
      %232 = vmatpush.msra.mxu0 0.0
      %233 = vmatpush.msra.mxu0 0.0
      %234 = vmatpush.msra.mxu0 0.0
      %235 = vmatpush.msra.mxu0 0.0
      %236 = vmatpush.msra.mxu0 0.0
      %237 = vmatpush.msra.mxu0 0.0
      %238 = vmatpush.msra.mxu0 %v211
      %239 = vmatmul.f32.gmra.mxu0 %v221
      %v240 = vpop.f32.mrf.mxu0
      %v241 = vadd.f32 %v217, %v240
      %242 = vdwg.mxu0
      %243 = vmatpush.msra.mxu0 0.0
      %244 = vmatpush.msra.mxu0 0.0
      %245 = vmatpush.msra.mxu0 0.0
      %246 = vmatpush.msra.mxu0 0.0
      %247 = vmatpush.msra.mxu0 0.0
      %248 = vmatpush.msra.mxu0 0.0
      %249 = vmatpush.msra.mxu0 0.0
      %250 = vmatpush.msra.mxu0 0.0
      %251 = vmatpush.msra.mxu0 0.0
      %252 = vmatpush.msra.mxu0 0.0
      %253 = vmatpush.msra.mxu0 0.0
      %254 = vmatpush.msra.mxu0 0.0
      %255 = vmatpush.msra.mxu0 0.0
      %256 = vmatpush.msra.mxu0 0.0
      %257 = vmatpush.msra.mxu0 0.0
      %258 = vmatpush.msra.mxu0 %v212
      %259 = vmatmul.f32.gmra.mxu0 %v221
      %v260 = vpop.f32.mrf.mxu0
      %v261 = vadd.f32 %v217, %v260
      %262 = vdwg.mxu0
      %v265 = vrot.slane %v261, 4
      %vm266 = vcmask 1043456
      %v267 = vsel %vm266, %v241, %v265
      %269 = vst [vmem:[%s208] sm:$0xff] %v267
      %s270 = smul.u32 2, %s19
      %p271 = scmp.lt.s32.totalorder %s18, 1
      %s272 = scalar_select %p271, %s18, 1
      %p273 = scmp.lt.s32.totalorder %s270, 1
      %s274 = scalar_select %p273, %s270, 1
      %s275 = smul.addr %s272, 2
      %s276 = sadd.s32 %s274, %s275
      %s277 = smul.addr %s276, 4
      %s278 = scalar_lea.vmem %s3, %s277
      // Predicated region
      $region33: #{atrous_module_forward.3} parent=31 // pred_check
        %p279 = pneg %p116
      $region34: #{atrous_module_forward.3} parent=31 // pred_check_branch
        %281 = sbr.rel (%p279) target = $region36
      $region35: #{atrous_module_forward.3} parent=31 // pred_region
        %s282 = smul.u32 2, %s19
      $region36: #{atrous_module_forward.3} parent=31 // pred_fallthru
        _
    $region32: #{atrous_module_forward.3} parent=5 // pred_fallthru
      _
    %p283 = scmp.le.s32.totalorder 2, %s9
    // Predicated region
    $region37: #{atrous_module_forward.3} parent=5 // pred_check
      %p284 = pneg %p283
    $region38: #{atrous_module_forward.3} parent=5 // pred_check_branch
      %286 = sbr.rel (%p284) target = $region40
    $region39: #{atrous_module_forward.3} parent=5 // pred_region
      %s287 = ssub.s32 %s9, 2
      // Predicated region
      $region41: #{atrous_module_forward.3} parent=39 // pred_check
        %p288 = pneg %p122
      $region42: #{atrous_module_forward.3} parent=39 // pred_check_branch
        %290 = sbr.rel (%p288) target = $region44
      $region43: #{atrous_module_forward.3} parent=39 // pred_region
        %s291 = smul.u32 2, %s21
        %p292 = scmp.lt.s32.totalorder %s20, 1
        %s293 = scalar_select %p292, %s20, 1
        %p294 = scmp.lt.s32.totalorder %s291, 1
        %s295 = scalar_select %p294, %s291, 1
        %s296 = smul.addr %s293, 2
        %s297 = sadd.s32 %s295, %s296
        %s298 = smul.addr %s297, 4
        %s299 = scalar_lea.vmem %s3, %s298
      $region44: #{atrous_module_forward.3} parent=39 // pred_fallthru
        _
    $region40: #{atrous_module_forward.3} parent=5 // pred_fallthru
      _
  $region6: #{atrous_module_forward.3} parent=0 // loop_footer
    %s13 = sadd.s32 1, %s9
  $region7: #{atrous_module_forward.3} parent=0 // loop_footer_branch
    %8 = sbr.rel target = $region3
  $region8: #{atrous_module_forward.3} parent=0 // loop_exit
    _

// kernel: atrous_module_forward.2
$region0: #{atrous_module_forward.2}
  #allocation0 [shape = 'u32[]', space=smem, size = 0x4, offset = 0x4, fixed_abs, tag = 'smem constant byte address 0x4 - core index']
  #allocation1 [shape = 'u32[72,128]{1,0:T(1,128)}', space=vmem, size = 0x9000, scoped, tag = 'internal scratch']
  #allocation2 [shape = 'f32[4,512]{1,0:T(4,128)}', space=vmem, size = 0x2000, scoped, tag = 'scratch operand']
  #allocation3 [shape = 'f32[36,256]{1,0:T(8,128)}', space=vmem, size = 0xa000, scoped, tag = 'scratch operand']
  %s0 = inlined_call_operand.vmem [shape: f32[2,4,256], index: 0, kind: input, shape index: {}]
  %s1 = inlined_call_operand.vmem [shape: f32[8,36], index: 1, kind: input, shape index: {}]
  %s2 = inlined_call_operand.vmem [shape: f32[9,256], index: 2, kind: input, shape index: {}]
  %s3 = inlined_call_operand.vmem [shape: f32[2,8,256], index: 3, kind: output, shape index: {0}]
  %s4 = inlined_call_operand.vmem [shape: f32[2,8,128], index: 4, kind: output, shape index: {1}]
  %s5 = inlined_call_operand.vmem [shape: f32[2,8,128], index: 5, kind: output, shape index: {2}]
  %6 = xla_tuple %s3, %s4, %s5
  %s7 = sld [smem:[#allocation0]]
  $region61: #{atrous_module_forward.2} parent=0
    _
  %s9 = ssub.s32 1, %s7
  %s10 = scalar_select 0, %s9, %s7
  loop: start=0, step=1, limit=4
  $region2: #{atrous_module_forward.2} parent=0 // loop_pre_header
    _
  $region3: #{atrous_module_forward.2} parent=0 // loop_header
    %s12 = sphi 0, %s16
    %p13 = scmp.ge.s32.totalorder %s12, 4
    %s22 = sphi 0, %s24
    %s25 = sphi 0, %s22
    %s26 = sphi 0, %s25
    %s42 = sphi 0, %s26
    %s46 = sphi 0, %s46
    %s48 = sphi 0, %s46
    %s49 = sphi 0, %s48
    %s63 = sphi 0, %s49
    %s67 = sphi 0, %s67
    %s69 = sphi 0, %s67
    %s70 = sphi 0, %s69
    %s84 = sphi 0, %s70
    %s90 = sphi 0, %s92
    %s93 = sphi 0, %s90
    %s94 = sphi 0, %s93
    %s110 = sphi 0, %s94
    %s116 = sphi 0, %s118
    %s119 = sphi 0, %s116
    %s120 = sphi 0, %s119
    %s136 = sphi 0, %s120
    %s142 = sphi 0, %s144
    %s145 = sphi 0, %s142
    %s146 = sphi 0, %s145
    %s162 = sphi 0, %s146
  $region4: #{atrous_module_forward.2} parent=0 // loop_header_branch
    %15 = sbr.rel (%p13) target = $region8
  $region5: #{atrous_module_forward.2} parent=0 // loop_body
    %s17 = ssub.s32 %s12, 1
    %s18 = ssub.s32 %s12, 2
    %s19 = sadd.s32 %s12, 1
    %s20 = ssub.s32 %s12, %s19
    %p21 = scmp.eq.s32.totalorder %s20, 0
    %s23 = sadd.s32 %s22, 1
    %s24 = scalar_select %p21, %s22, %s23
    %p27 = pneg %p21
    %p28 = scmp.eq.s32.totalorder %s12, 1
    %p29 = por %p27, %p28
    %p30 = scmp.ne.s32.totalorder %s22, %s25
    %p31 = scmp.eq.s32.totalorder %s12, 0
    %p32 = por %p30, %p31
    %p33 = scmp.ne.s32.totalorder %s22, %s25
    %p34 = scmp.eq.s32.totalorder %s17, 1
    %p35 = por %p33, %p34
    %p36 = scmp.ne.s32.totalorder %s25, %s26
    %p37 = scmp.eq.s32.totalorder %s17, 0
    %p38 = por %p36, %p37
    %p39 = scmp.ne.s32.totalorder %s25, %s26
    %p40 = scmp.eq.s32.totalorder %s18, 1
    %p41 = por %p39, %p40
    %p43 = scmp.ne.s32.totalorder %s26, %s42
    %p44 = scmp.eq.s32.totalorder %s18, 0
    %p45 = por %p43, %p44
    %s47 = sadd.s32 %s46, 1
    %p50 = scmp.eq.s32.totalorder %s12, 1
    %p51 = scmp.ne.s32.totalorder %s46, %s48
    %p52 = scmp.eq.s32.totalorder %s12, 0
    %p53 = por %p51, %p52
    %p54 = scmp.ne.s32.totalorder %s46, %s48
    %p55 = scmp.eq.s32.totalorder %s17, 1
    %p56 = por %p54, %p55
    %p57 = scmp.ne.s32.totalorder %s48, %s49
    %p58 = scmp.eq.s32.totalorder %s17, 0
    %p59 = por %p57, %p58
    %p60 = scmp.ne.s32.totalorder %s48, %s49
    %p61 = scmp.eq.s32.totalorder %s18, 1
    %p62 = por %p60, %p61
    %p64 = scmp.ne.s32.totalorder %s49, %s63
    %p65 = scmp.eq.s32.totalorder %s18, 0
    %p66 = por %p64, %p65
    %s68 = sadd.s32 %s67, 1
    %p71 = scmp.eq.s32.totalorder %s12, 1
    %p72 = scmp.ne.s32.totalorder %s67, %s69
    %p73 = scmp.eq.s32.totalorder %s12, 0
    %p74 = por %p72, %p73
    %p75 = scmp.ne.s32.totalorder %s67, %s69
    %p76 = scmp.eq.s32.totalorder %s17, 1
    %p77 = por %p75, %p76
    %p78 = scmp.ne.s32.totalorder %s69, %s70
    %p79 = scmp.eq.s32.totalorder %s17, 0
    %p80 = por %p78, %p79
    %p81 = scmp.ne.s32.totalorder %s69, %s70
    %p82 = scmp.eq.s32.totalorder %s18, 1
    %p83 = por %p81, %p82
    %p85 = scmp.ne.s32.totalorder %s70, %s84
    %p86 = scmp.eq.s32.totalorder %s18, 0
    %p87 = por %p85, %p86
    %s88 = ssub.s32 %s12, %s19
    %p89 = scmp.eq.s32.totalorder %s88, 0
    %s91 = sadd.s32 %s90, 1
    %s92 = scalar_select %p89, %s90, %s91
    %p95 = pneg %p89
    %p96 = scmp.eq.s32.totalorder %s12, 1
    %p97 = por %p95, %p96
    %p98 = scmp.ne.s32.totalorder %s90, %s93
    %p99 = scmp.eq.s32.totalorder %s12, 0
    %p100 = por %p98, %p99
    %p101 = scmp.ne.s32.totalorder %s90, %s93
    %p102 = scmp.eq.s32.totalorder %s17, 1
    %p103 = por %p101, %p102
    %p104 = scmp.ne.s32.totalorder %s93, %s94
    %p105 = scmp.eq.s32.totalorder %s17, 0
    %p106 = por %p104, %p105
    %p107 = scmp.ne.s32.totalorder %s93, %s94
    %p108 = scmp.eq.s32.totalorder %s18, 1
    %p109 = por %p107, %p108
    %p111 = scmp.ne.s32.totalorder %s94, %s110
    %p112 = scmp.eq.s32.totalorder %s18, 0
    %p113 = por %p111, %p112
    %s114 = ssub.s32 %s12, %s19
    %p115 = scmp.eq.s32.totalorder %s114, 0
    %s117 = sadd.s32 %s116, 1
    %s118 = scalar_select %p115, %s116, %s117
    %p121 = pneg %p115
    %p122 = scmp.eq.s32.totalorder %s12, 1
    %p123 = por %p121, %p122
    %p124 = scmp.ne.s32.totalorder %s116, %s119
    %p125 = scmp.eq.s32.totalorder %s12, 0
    %p126 = por %p124, %p125
    %p127 = scmp.ne.s32.totalorder %s116, %s119
    %p128 = scmp.eq.s32.totalorder %s17, 1
    %p129 = por %p127, %p128
    %p130 = scmp.ne.s32.totalorder %s119, %s120
    %p131 = scmp.eq.s32.totalorder %s17, 0
    %p132 = por %p130, %p131
    %p133 = scmp.ne.s32.totalorder %s119, %s120
    %p134 = scmp.eq.s32.totalorder %s18, 1
    %p135 = por %p133, %p134
    %p137 = scmp.ne.s32.totalorder %s120, %s136
    %p138 = scmp.eq.s32.totalorder %s18, 0
    %p139 = por %p137, %p138
    %s140 = ssub.s32 %s12, %s19
    %p141 = scmp.eq.s32.totalorder %s140, 0
    %s143 = sadd.s32 %s142, 1
    %s144 = scalar_select %p141, %s142, %s143
    %p147 = pneg %p141
    %p148 = scmp.eq.s32.totalorder %s12, 1
    %p149 = por %p147, %p148
    %p150 = scmp.ne.s32.totalorder %s142, %s145
    %p151 = scmp.eq.s32.totalorder %s12, 0
    %p152 = por %p150, %p151
    %p153 = scmp.ne.s32.totalorder %s142, %s145
    %p154 = scmp.eq.s32.totalorder %s17, 1
    %p155 = por %p153, %p154
    %p156 = scmp.ne.s32.totalorder %s145, %s146
    %p157 = scmp.eq.s32.totalorder %s17, 0
    %p158 = por %p156, %p157
    %p159 = scmp.ne.s32.totalorder %s145, %s146
    %p160 = scmp.eq.s32.totalorder %s18, 1
    %p161 = por %p159, %p160
    %p163 = scmp.ne.s32.totalorder %s146, %s162
    %p164 = scmp.eq.s32.totalorder %s18, 0
    %p165 = por %p163, %p164
    %p166 = scmp.le.s32.totalorder 1, %s12
    %p167 = scmp.lt.s32.totalorder %s12, 3
    %p168 = pnand %p166, %p167
    %p169 = pneg %p168
    // Predicated region
    $region9: #{atrous_module_forward.2} parent=5 // pred_check
      _
    $region10: #{atrous_module_forward.2} parent=5 // pred_check_branch
      %171 = sbr.rel (%p168) target = $region12
    $region11: #{atrous_module_forward.2} parent=5 // pred_region
      %s172 = ssub.s32 %s12, 1
      // Predicated region
      $region13: #{atrous_module_forward.2} parent=11 // pred_check
        %p173 = pneg %p59
      $region14: #{atrous_module_forward.2} parent=11 // pred_check_branch
        %175 = sbr.rel (%p173) target = $region16
      $region15: #{atrous_module_forward.2} parent=11 // pred_region
        _
      $region16: #{atrous_module_forward.2} parent=11 // pred_fallthru
        _
      // Predicated region
      $region17: #{atrous_module_forward.2} parent=11 // pred_check
        %p176 = pneg %p80
      $region18: #{atrous_module_forward.2} parent=11 // pred_check_branch
        %178 = sbr.rel (%p176) target = $region20
      $region19: #{atrous_module_forward.2} parent=11 // pred_region
        _
      $region20: #{atrous_module_forward.2} parent=11 // pred_fallthru
        _
    $region12: #{atrous_module_forward.2} parent=5 // pred_fallthru
      _
    %p179 = scmp.lt.s32.totalorder %s12, 2
    // Predicated region
    $region21: #{atrous_module_forward.2} parent=5 // pred_check
      %p180 = pneg %p179
    $region22: #{atrous_module_forward.2} parent=5 // pred_check_branch
      %182 = sbr.rel (%p180) target = $region24
    $region23: #{atrous_module_forward.2} parent=5 // pred_region
      // Predicated region
      $region25: #{atrous_module_forward.2} parent=23 // pred_check
        %p183 = pneg %p32
      $region26: #{atrous_module_forward.2} parent=23 // pred_check_branch
        %185 = sbr.rel (%p183) target = $region28
      $region27: #{atrous_module_forward.2} parent=23 // pred_region
        %p186 = scmp.lt.s32.totalorder %s12, 1
        %s187 = scalar_select %p186, %s12, 1
        %s188 = smul.addr %s187, 2
        %s189 = smul.addr %s188, 4
        %s190 = scalar_lea.vmem %s0, %s189
      $region28: #{atrous_module_forward.2} parent=23 // pred_fallthru
        _
    $region24: #{atrous_module_forward.2} parent=5 // pred_fallthru
      _
    %p191 = scmp.le.s32.totalorder 1, %s12
    %p192 = scmp.lt.s32.totalorder %s12, 3
    %p193 = pnand %p191, %p192
    %p194 = pneg %p193
    // Predicated region
    $region29: #{atrous_module_forward.2} parent=5 // pred_check
      _
    $region30: #{atrous_module_forward.2} parent=5 // pred_check_branch
      %196 = sbr.rel (%p193) target = $region32
    $region31: #{atrous_module_forward.2} parent=5 // pred_region
      %s197 = ssub.s32 %s12, 1
      %p198 = scmp.lt.s32.totalorder %s17, 1
      %s199 = scalar_select %p198, %s17, 1
      %s200 = smul.addr %s199, 2
      %s201 = smul.addr %s200, 4
      %s202 = scalar_lea.vmem %s0, %s201
      %p203 = pneg %p38
      %p204 = pneg %p35
      %p205 = pneg %p59
      %p206 = pneg %p56
      %p207 = pneg %p80
      %p208 = pneg %p77
      %p209 = pneg %p106
      %p210 = pneg %p103
      %p211 = scmp.lt.s32.totalorder %s17, 1
      %s212 = scalar_select %p211, %s17, 1
      %s213 = smul.addr %s212, 2
      %s214 = smul.addr %s213, 8
      %s215 = scalar_lea.vmem %s3, %s214
      %p216 = pneg %p132
      %p217 = pneg %p129
      %p218 = scmp.lt.s32.totalorder %s17, 1
      %s219 = scalar_select %p218, %s17, 1
      %s220 = smul.addr %s219, 8
      %s221 = scalar_lea.vmem %s4, %s220
      %p222 = pneg %p158
      %p223 = pneg %p155
      %p224 = scmp.lt.s32.totalorder %s17, 1
      %s225 = scalar_select %p224, %s17, 1
      %s226 = smul.addr %s225, 8
      %s227 = scalar_lea.vmem %s5, %s226
      %p228 = scmp.lt.s32.totalorder %s17, 1
      %s229 = scalar_select %p228, %s17, 1
      %s230 = smul.addr %s229, 2
      %s231 = smul.addr %s230, 4
      %s232 = scalar_lea.vmem %s0, %s231
      %p233 = scmp.lt.s32.totalorder %s17, 1
      %s234 = scalar_select %p233, %s17, 1
      %s235 = smul.addr %s234, 2
      %s236 = smul.addr %s235, 8
      %s237 = scalar_lea.vmem %s3, %s236
      %p238 = scmp.lt.s32.totalorder %s17, 1
      %s239 = scalar_select %p238, %s17, 1
      %s240 = smul.addr %s239, 8
      %s241 = scalar_lea.vmem %s4, %s240
      %p242 = scmp.lt.s32.totalorder %s17, 1
      %s243 = scalar_select %p242, %s17, 1
      %s244 = smul.addr %s243, 8
      %s245 = scalar_lea.vmem %s5, %s244
      %246 = vst [vmem:[#allocation2] sm:$0xf] 0.0
      %247 = vst [vmem:[#allocation2 + $0xc] sm:$0xf] 0.0
      %v248 = vld [vmem:[%s232] sm:$0xff]
      %249 = vst [vmem:[#allocation2 + $0x4] sm:$0xff] %v248
      %v250 = vld [vmem:[#allocation2] sm:$0xff]
      %v251 = vld [vmem:[#allocation2 + $0x8] sm:$0xf]
      %v252 = vld [vmem:[%s2] ss:$8 sm:$0x3]
      %v254 = vperm.slane %v252, 0
      %v255 = vperm.slane %v252, 1
      %v256 = vrot.slane %v255, 4
      %vm257 = vcmask 1043456
      %v258 = vsel %vm257, %v254, %v256
      %259 = vrot.lane.b32.xlu0 %v258, 94
      %v260 = vpop.permute.xlu0 %259
      %v261 = vrot.slane %v260, 4
      %vm262 = vcmask 769024
      %v263 = vsel %vm262, %v261, %v260
      %v266 = vmul.f32 %v250, %v263
      %v267 = vmul.f32 %v251, %v261
      %270 = vst [vmem:[#allocation1] ss:$2 sm:$0xff] %v266
      %s271 = scalar_lea.vmem [#allocation1], 16
      %272 = vst [vmem:[%s271] ss:$2 sm:$0xff] %v267
      %v273 = vld.sshfl [vmem:[#allocation1] sm:$0xff pattern:$0x75316420]
      %v274 = vld.sshfl [vmem:[#allocation1 + $0x8] sm:$0xff pattern:$0x75316420]
      %v275 = vld.sshfl [vmem:[#allocation1 + $0x10] sm:$0xff pattern:$0x75316420]
      %276 = vrot.lane.b32.xlu0 %v273, 34
      %v277 = vpop.permute.xlu0 %276
      %278 = vrot.lane.b32.xlu0 %v274, 34
      %v279 = vpop.permute.xlu0 %278
      %280 = vrot.lane.b32.xlu0 %v275, 34
      %v281 = vpop.permute.xlu0 %280
      %vm282 = vcmask 277504
      %v283 = vsel %vm282, %v277, %v279
      %v284 = vsel %vm282, %v279, %v281
      %287 = vst [vmem:[#allocation3] sm:$0xf] %v283
      %288 = vst [vmem:[#allocation3 + $0x8] sm:$0xf] %v284
      %v289 = vld [vmem:[#allocation2] sm:$0xff]
      %v290 = vld [vmem:[#allocation2 + $0x8] sm:$0xf]
      %s291 = scalar_lea.vmem %s2, 1
      %v292 = vld [vmem:[%s291] ss:$8 sm:$0x3]
      %v294 = vperm.slane %v292, 0
      %v295 = vperm.slane %v292, 1
      %v296 = vrot.slane %v295, 4
      %v297 = vsel %vm257, %v294, %v296
      %298 = vrot.lane.b32.xlu0 %v297, 96
      %v299 = vpop.permute.xlu0 %298
      %v300 = vrot.slane %v299, 4
      %vm301 = vcmask 785408
      %v302 = vsel %vm301, %v300, %v299
      %v305 = vmul.f32 %v289, %v302
      %v306 = vmul.f32 %v290, %v300
      %s309 = scalar_lea.vmem [#allocation1], 1
      %310 = vst [vmem:[%s309] ss:$2 sm:$0xff] %v305
      %s311 = scalar_lea.vmem [#allocation1], 17
      %312 = vst [vmem:[%s311] ss:$2 sm:$0xff] %v306
      %v313 = vld.sshfl [vmem:[#allocation1] sm:$0xff pattern:$0x75316420]
      %v314 = vld.sshfl [vmem:[#allocation1 + $0x8] sm:$0xff pattern:$0x75316420]
      %v315 = vld.sshfl [vmem:[#allocation1 + $0x10] sm:$0xff pattern:$0x75316420]
      %316 = vrot.lane.b32.xlu0 %v313, 32
      %v317 = vpop.permute.xlu0 %316
      %318 = vrot.lane.b32.xlu0 %v314, 32
      %v319 = vpop.permute.xlu0 %318
      %320 = vrot.lane.b32.xlu0 %v315, 32
      %v321 = vpop.permute.xlu0 %320
      %vm322 = vcmask 261120
      %v323 = vsel %vm322, %v317, %v319
      %v324 = vsel %vm322, %v319, %v321
      %327 = vst [vmem:[#allocation3] sm:$0xf0] %v323
      %328 = vst [vmem:[#allocation3 + $0x8] sm:$0xf0] %v324
      %v329 = vld [vmem:[#allocation2] sm:$0xff]
      %v330 = vld [vmem:[#allocation2 + $0x8] sm:$0xf]
      %s331 = scalar_lea.vmem %s2, 2
      %v332 = vld [vmem:[%s331] ss:$8 sm:$0x3]
      %v334 = vperm.slane %v332, 0
      %v335 = vperm.slane %v332, 1
      %v336 = vrot.slane %v335, 4
      %v337 = vsel %vm257, %v334, %v336
      %338 = vrot.lane.b32.xlu0 %v337, 98
      %v339 = vpop.permute.xlu0 %338
      %v340 = vrot.slane %v339, 4
      %vm341 = vcmask 801792
      %v342 = vsel %vm341, %v340, %v339
      %v345 = vmul.f32 %v329, %v342
      %v346 = vmul.f32 %v330, %v340
      %349 = vst [vmem:[#allocation1] ss:$2 sm:$0xff] %v345
      %s350 = scalar_lea.vmem [#allocation1], 16
      %351 = vst [vmem:[%s350] ss:$2 sm:$0xff] %v346
      %v352 = vld.sshfl [vmem:[#allocation1] sm:$0xff pattern:$0x75316420]
      %v353 = vld.sshfl [vmem:[#allocation1 + $0x8] sm:$0xff pattern:$0x75316420]
      %v354 = vld.sshfl [vmem:[#allocation1 + $0x10] sm:$0xff pattern:$0x75316420]
      %355 = vrot.lane.b32.xlu0 %v352, 30
      %v356 = vpop.permute.xlu0 %355
      %357 = vrot.lane.b32.xlu0 %v353, 30
      %v358 = vpop.permute.xlu0 %357
      %359 = vrot.lane.b32.xlu0 %v354, 30
      %v360 = vpop.permute.xlu0 %359
      %vm361 = vcmask 244736
      %v362 = vsel %vm361, %v356, %v358
      %v363 = vsel %vm361, %v358, %v360
      %366 = vst [vmem:[#allocation3 + $0x10] sm:$0xf] %v362
      %367 = vst [vmem:[#allocation3 + $0x18] sm:$0xf] %v363
      %v368 = vld [vmem:[#allocation2] sm:$0xff]
      %v369 = vld [vmem:[#allocation2 + $0x8] sm:$0xf]
      %s370 = scalar_lea.vmem %s2, 3
      %v371 = vld [vmem:[%s370] ss:$8 sm:$0x3]
      %v373 = vperm.slane %v371, 0
      %v374 = vperm.slane %v371, 1
      %v375 = vrot.slane %v374, 4
      %v376 = vsel %vm257, %v373, %v375
      %377 = vrot.lane.b32.xlu0 %v376, 126
      %v378 = vpop.permute.xlu0 %377
      %v379 = vrot.slane %v378, 4
      %vm380 = vcmask 1031168
      %v381 = vsel %vm380, %v379, %v378
      %v384 = vmul.f32 %v368, %v381
      %v385 = vmul.f32 %v369, %v379
      %s388 = scalar_lea.vmem [#allocation1], 1
      %389 = vst [vmem:[%s388] ss:$2 sm:$0xff] %v384
      %s390 = scalar_lea.vmem [#allocation1], 17
      %391 = vst [vmem:[%s390] ss:$2 sm:$0xff] %v385
      %v392 = vld.sshfl [vmem:[#allocation1] sm:$0xff pattern:$0x75316420]
      %v393 = vld.sshfl [vmem:[#allocation1 + $0x8] sm:$0xff pattern:$0x75316420]
      %v394 = vld.sshfl [vmem:[#allocation1 + $0x10] sm:$0xff pattern:$0x75316420]
      %395 = vrot.lane.b32.xlu0 %v392, 2
      %v396 = vpop.permute.xlu0 %395
      %397 = vrot.lane.b32.xlu0 %v393, 2
      %v398 = vpop.permute.xlu0 %397
      %399 = vrot.lane.b32.xlu0 %v394, 2
      %v400 = vpop.permute.xlu0 %399
      %vm401 = vcmask 15360
      %v402 = vsel %vm401, %v396, %v398
      %v403 = vsel %vm401, %v398, %v400
      %406 = vst [vmem:[#allocation3 + $0x10] sm:$0xf0] %v402
      %407 = vst [vmem:[#allocation3 + $0x18] sm:$0xf0] %v403
      %v408 = vld [vmem:[#allocation2 + $0x4] sm:$0xff]
      %s409 = scalar_lea.vmem %s2, 4
      %v410 = vld [vmem:[%s409] ss:$8 sm:$0x3]
      %v412 = vperm.slane %v410, 0
      %v413 = vperm.slane %v410, 1
      %v414 = vrot.slane %v413, 4
      %v415 = vsel %vm257, %v412, %v414
      %v417 = vmul.f32 %v408, %v415
      %419 = vst [vmem:[#allocation1] ss:$2 sm:$0xff] %v417
      %v420 = vld.sshfl [vmem:[#allocation1] sm:$0xff pattern:$0x75316420]
      %v421 = vld.sshfl [vmem:[#allocation1 + $0x8] sm:$0xff pattern:$0x75316420]
      %424 = vst [vmem:[#allocation3 + $0x20] sm:$0xf] %v420
      %425 = vst [vmem:[#allocation3 + $0x28] sm:$0xf] %v421
      %v426 = vld [vmem:[#allocation2 + $0x4] sm:$0xff]
      %v427 = vld [vmem:[#allocation2 + $0xc] sm:$0xf]
      %s428 = scalar_lea.vmem %s2, 5
      %v429 = vld [vmem:[%s428] ss:$8 sm:$0x3]
      %v431 = vperm.slane %v429, 0
      %v432 = vperm.slane %v429, 1
      %v433 = vrot.slane %v432, 4
      %v434 = vsel %vm257, %v431, %v433
      %435 = vrot.lane.b32.xlu0 %v434, 2
      %v436 = vpop.permute.xlu0 %435
      %v437 = vrot.slane %v436, 4
      %v438 = vsel %vm401, %v437, %v436
      %v441 = vmul.f32 %v426, %v438
      %v442 = vmul.f32 %v427, %v437
      %s445 = scalar_lea.vmem [#allocation1], 1
      %446 = vst [vmem:[%s445] ss:$2 sm:$0xff] %v441
      %s447 = scalar_lea.vmem [#allocation1], 17
      %448 = vst [vmem:[%s447] ss:$2 sm:$0xff] %v442
      %v449 = vld.sshfl [vmem:[#allocation1] sm:$0xff pattern:$0x75316420]
      %v450 = vld.sshfl [vmem:[#allocation1 + $0x8] sm:$0xff pattern:$0x75316420]
      %v451 = vld.sshfl [vmem:[#allocation1 + $0x10] sm:$0xff pattern:$0x75316420]
      %452 = vrot.lane.b32.xlu0 %v449, 126
      %v453 = vpop.permute.xlu0 %452
      %454 = vrot.lane.b32.xlu0 %v450, 126
      %v455 = vpop.permute.xlu0 %454
      %456 = vrot.lane.b32.xlu0 %v451, 126
      %v457 = vpop.permute.xlu0 %456
      %v458 = vsel %vm380, %v453, %v455
      %v459 = vsel %vm380, %v455, %v457
      %462 = vst [vmem:[#allocation3 + $0x20] sm:$0xf0] %v458
      %463 = vst [vmem:[#allocation3 + $0x28] sm:$0xf0] %v459
      %v464 = vld [vmem:[#allocation2 + $0x4] sm:$0xff]
      %v465 = vld [vmem:[#allocation2 + $0xc] sm:$0xf]
      %s466 = scalar_lea.vmem %s2, 6
      %v467 = vld [vmem:[%s466] ss:$8 sm:$0x3]
      %v469 = vperm.slane %v467, 0
      %v470 = vperm.slane %v467, 1
      %v471 = vrot.slane %v470, 4
      %v472 = vsel %vm257, %v469, %v471
      %473 = vrot.lane.b32.xlu0 %v472, 30
      %v474 = vpop.permute.xlu0 %473
      %v475 = vrot.slane %v474, 4
      %v476 = vsel %vm361, %v475, %v474
      %v479 = vmul.f32 %v464, %v476
      %v480 = vmul.f32 %v465, %v475
      %483 = vst [vmem:[#allocation1] ss:$2 sm:$0xff] %v479
      %s484 = scalar_lea.vmem [#allocation1], 16
      %485 = vst [vmem:[%s484] ss:$2 sm:$0xff] %v480
      %v486 = vld.sshfl [vmem:[#allocation1] sm:$0xff pattern:$0x75316420]
      %v487 = vld.sshfl [vmem:[#allocation1 + $0x8] sm:$0xff pattern:$0x75316420]
      %v488 = vld.sshfl [vmem:[#allocation1 + $0x10] sm:$0xff pattern:$0x75316420]
      %489 = vrot.lane.b32.xlu0 %v486, 98
      %v490 = vpop.permute.xlu0 %489
      %491 = vrot.lane.b32.xlu0 %v487, 98
      %v492 = vpop.permute.xlu0 %491
      %493 = vrot.lane.b32.xlu0 %v488, 98
      %v494 = vpop.permute.xlu0 %493
      %v495 = vsel %vm341, %v490, %v492
      %v496 = vsel %vm341, %v492, %v494
      %499 = vst [vmem:[#allocation3 + $0x30] sm:$0xf] %v495
      %500 = vst [vmem:[#allocation3 + $0x38] sm:$0xf] %v496
      %v501 = vld [vmem:[#allocation2 + $0x4] sm:$0xff]
      %v502 = vld [vmem:[#allocation2 + $0xc] sm:$0xf]
      %s503 = scalar_lea.vmem %s2, 7
      %v504 = vld [vmem:[%s503] ss:$8 sm:$0x3]
      %v506 = vperm.slane %v504, 0
      %v507 = vperm.slane %v504, 1
      %v508 = vrot.slane %v507, 4
      %v509 = vsel %vm257, %v506, %v508
      %510 = vrot.lane.b32.xlu0 %v509, 32
      %v511 = vpop.permute.xlu0 %510
      %v512 = vrot.slane %v511, 4
      %v513 = vsel %vm322, %v512, %v511
      %v516 = vmul.f32 %v501, %v513
      %v517 = vmul.f32 %v502, %v512
      %s520 = scalar_lea.vmem [#allocation1], 1
      %521 = vst [vmem:[%s520] ss:$2 sm:$0xff] %v516
      %s522 = scalar_lea.vmem [#allocation1], 17
      %523 = vst [vmem:[%s522] ss:$2 sm:$0xff] %v517
      %v524 = vld.sshfl [vmem:[#allocation1] sm:$0xff pattern:$0x75316420]
      %v525 = vld.sshfl [vmem:[#allocation1 + $0x8] sm:$0xff pattern:$0x75316420]
      %v526 = vld.sshfl [vmem:[#allocation1 + $0x10] sm:$0xff pattern:$0x75316420]
      %527 = vrot.lane.b32.xlu0 %v524, 96
      %v528 = vpop.permute.xlu0 %527
      %529 = vrot.lane.b32.xlu0 %v525, 96
      %v530 = vpop.permute.xlu0 %529
      %531 = vrot.lane.b32.xlu0 %v526, 96
      %v532 = vpop.permute.xlu0 %531
      %v533 = vsel %vm301, %v528, %v530
      %v534 = vsel %vm301, %v530, %v532
      %537 = vst [vmem:[#allocation3 + $0x30] sm:$0xf0] %v533
      %538 = vst [vmem:[#allocation3 + $0x38] sm:$0xf0] %v534
      %v539 = vld [vmem:[#allocation2 + $0x4] sm:$0xff]
      %v540 = vld [vmem:[#allocation2 + $0xc] sm:$0xf]
      %s541 = scalar_lea.vmem %s2, 16
      %v542 = vld [vmem:[%s541] ss:$8 sm:$0x3]
      %v544 = vperm.slane %v542, 0
      %v545 = vperm.slane %v542, 1
      %v546 = vrot.slane %v545, 4
      %v547 = vsel %vm257, %v544, %v546
      %548 = vrot.lane.b32.xlu0 %v547, 34
      %v549 = vpop.permute.xlu0 %548
      %v550 = vrot.slane %v549, 4
      %v551 = vsel %vm282, %v550, %v549
      %v554 = vmul.f32 %v539, %v551
      %v555 = vmul.f32 %v540, %v550
      %558 = vst [vmem:[#allocation1] ss:$2 sm:$0xff] %v554
      %s559 = scalar_lea.vmem [#allocation1], 16
      %560 = vst [vmem:[%s559] ss:$2 sm:$0xff] %v555
      %v561 = vld.sshfl [vmem:[#allocation1] sm:$0xff pattern:$0x75316420]
      %v562 = vld.sshfl [vmem:[#allocation1 + $0x8] sm:$0xff pattern:$0x75316420]
      %v563 = vld.sshfl [vmem:[#allocation1 + $0x10] sm:$0xff pattern:$0x75316420]
      %564 = vrot.lane.b32.xlu0 %v561, 94
      %v565 = vpop.permute.xlu0 %564
      %566 = vrot.lane.b32.xlu0 %v562, 94
      %v567 = vpop.permute.xlu0 %566
      %568 = vrot.lane.b32.xlu0 %v563, 94
      %v569 = vpop.permute.xlu0 %568
      %v570 = vsel %vm262, %v565, %v567
      %v571 = vsel %vm262, %v567, %v569
      %574 = vst [vmem:[#allocation3 + $0x40] sm:$0xf] %v570
      %575 = vst [vmem:[#allocation3 + $0x48] sm:$0xf] %v571
      %v576 = vld [vmem:[%s1] sm:$0xff]
      %v577 = vld [vmem:[#allocation3] sm:$0xff]
      %v578 = vld [vmem:[#allocation3 + $0x8] sm:$0xff]
      %v579 = vld [vmem:[#allocation3 + $0x10] sm:$0xff]
      %v580 = vld [vmem:[#allocation3 + $0x18] sm:$0xff]
      %v581 = vld [vmem:[#allocation3 + $0x20] sm:$0xff]
      %v582 = vld [vmem:[#allocation3 + $0x28] sm:$0xff]
      %v583 = vld [vmem:[#allocation3 + $0x30] sm:$0xff]
      %v584 = vld [vmem:[#allocation3 + $0x38] sm:$0xff]
      %v585 = vld [vmem:[#allocation3 + $0x40] sm:$0xf]
      %v586 = vld [vmem:[#allocation3 + $0x48] sm:$0xf]
      %vm587 = vcmask 293888
      %v589 = vsel %vm587, %v576, 0
      %v592 = vsel %vm257, %v585, 0
      %v595 = vsel %vm257, %v586, 0
      %597 = vmatpush.msra.mxu0 0.0
      %598 = vmatpush.msra.mxu0 0.0
      %599 = vmatpush.msra.mxu0 0.0
      %600 = vmatpush.msra.mxu0 0.0
      %601 = vmatpush.msra.mxu0 0.0
      %602 = vmatpush.msra.mxu0 0.0
      %603 = vmatpush.msra.mxu0 0.0
      %604 = vmatpush.msra.mxu0 0.0
      %605 = vmatpush.msra.mxu0 0.0
      %606 = vmatpush.msra.mxu0 0.0
      %607 = vmatpush.msra.mxu0 0.0
      %608 = vmatpush.msra.mxu0 %v592
      %609 = vmatpush.msra.mxu0 %v583
      %610 = vmatpush.msra.mxu0 %v581
      %611 = vmatpush.msra.mxu0 %v579
      %612 = vmatpush.msra.mxu0 %v577
      %613 = vmatmul.f32.gmra.mxu0 %v589
      %v614 = vpop.f32.mrf.mxu0
      %v615 = vadd.f32 0.0, %v614
      %616 = vdwg.mxu0
      %617 = vmatpush.msra.mxu0 0.0
      %618 = vmatpush.msra.mxu0 0.0
      %619 = vmatpush.msra.mxu0 0.0
      %620 = vmatpush.msra.mxu0 0.0
      %621 = vmatpush.msra.mxu0 0.0
      %622 = vmatpush.msra.mxu0 0.0
      %623 = vmatpush.msra.mxu0 0.0
      %624 = vmatpush.msra.mxu0 0.0
      %625 = vmatpush.msra.mxu0 0.0
      %626 = vmatpush.msra.mxu0 0.0
      %627 = vmatpush.msra.mxu0 0.0
      %628 = vmatpush.msra.mxu0 %v595
      %629 = vmatpush.msra.mxu0 %v584
      %630 = vmatpush.msra.mxu0 %v582
      %631 = vmatpush.msra.mxu0 %v580
      %632 = vmatpush.msra.mxu0 %v578
      %633 = vmatmul.f32.gmra.mxu0 %v589
      %v634 = vpop.f32.mrf.mxu0
      %v635 = vadd.f32 0.0, %v634
      %636 = vdwg.mxu0
      %637 = vst [vmem:[%s237] sm:$0xff] %v615
      %638 = vst [vmem:[%s237 + $0x8] sm:$0xff] %v635
      %v639 = vadd.f32 %v615, %v635
      %640 = vadd.xlane.f32.xlu0 %v639
      %v641 = vpop.xlane.xlu0 %640
      %v642 = vmul.f32 %v641, 0.00390625
      %v643 = vsub.f32 %v615, %v642
      %v644 = vsub.f32 %v635, %v642
      %v645 = vmul.f32 %v643, %v643
      %v646 = vmul.f32 %v644, %v644
      %v647 = vadd.f32 %v645, %v646
      %648 = vadd.xlane.f32.xlu0 %v647
      %v649 = vpop.xlane.xlu0 %648
      %650 = vst [vmem:[%s241] sm:$0xff] %v641
      %651 = vst [vmem:[%s245] sm:$0xff] %v649
      %p652 = scmp.lt.s32.totalorder %s17, 1
      %s653 = scalar_select %p652, %s17, 1
      %s654 = smul.addr %s653, 2
      %s655 = smul.addr %s654, 8
      %s656 = scalar_lea.vmem %s3, %s655
      %p657 = scmp.lt.s32.totalorder %s17, 1
      %s658 = scalar_select %p657, %s17, 1
      %s659 = smul.addr %s658, 8
      %s660 = scalar_lea.vmem %s4, %s659
      %p661 = scmp.lt.s32.totalorder %s17, 1
      %s662 = scalar_select %p661, %s17, 1
      %s663 = smul.addr %s662, 8
      %s664 = scalar_lea.vmem %s5, %s663
      // Predicated region
      $region33: #{atrous_module_forward.2} parent=31 // pred_check
        %p665 = pneg %p103
      $region34: #{atrous_module_forward.2} parent=31 // pred_check_branch
        %667 = sbr.rel (%p665) target = $region36
      $region35: #{atrous_module_forward.2} parent=31 // pred_region
        _
      $region36: #{atrous_module_forward.2} parent=31 // pred_fallthru
        _
      // Predicated region
      $region37: #{atrous_module_forward.2} parent=31 // pred_check
        %p668 = pneg %p129
      $region38: #{atrous_module_forward.2} parent=31 // pred_check_branch
        %670 = sbr.rel (%p668) target = $region40
      $region39: #{atrous_module_forward.2} parent=31 // pred_region
        _
      $region40: #{atrous_module_forward.2} parent=31 // pred_fallthru
        _
      // Predicated region
      $region41: #{atrous_module_forward.2} parent=31 // pred_check
        %p671 = pneg %p155
      $region42: #{atrous_module_forward.2} parent=31 // pred_check_branch
        %673 = sbr.rel (%p671) target = $region44
      $region43: #{atrous_module_forward.2} parent=31 // pred_region
        _
      $region44: #{atrous_module_forward.2} parent=31 // pred_fallthru
        _
    $region32: #{atrous_module_forward.2} parent=5 // pred_fallthru
      _
    %p674 = scmp.le.s32.totalorder 2, %s12
    // Predicated region
    $region45: #{atrous_module_forward.2} parent=5 // pred_check
      %p675 = pneg %p674
    $region46: #{atrous_module_forward.2} parent=5 // pred_check_branch
      %677 = sbr.rel (%p675) target = $region48
    $region47: #{atrous_module_forward.2} parent=5 // pred_region
      %s678 = ssub.s32 %s12, 2
      // Predicated region
      $region49: #{atrous_module_forward.2} parent=47 // pred_check
        %p679 = pneg %p109
      $region50: #{atrous_module_forward.2} parent=47 // pred_check_branch
        %681 = sbr.rel (%p679) target = $region52
      $region51: #{atrous_module_forward.2} parent=47 // pred_region
        %p682 = scmp.lt.s32.totalorder %s18, 1
        %s683 = scalar_select %p682, %s18, 1
        %s684 = smul.addr %s683, 2
        %s685 = smul.addr %s684, 8
        %s686 = scalar_lea.vmem %s3, %s685
      $region52: #{atrous_module_forward.2} parent=47 // pred_fallthru
        _
      // Predicated region
      $region53: #{atrous_module_forward.2} parent=47 // pred_check
        %p687 = pneg %p135
      $region54: #{atrous_module_forward.2} parent=47 // pred_check_branch
        %689 = sbr.rel (%p687) target = $region56
      $region55: #{atrous_module_forward.2} parent=47 // pred_region
        %p690 = scmp.lt.s32.totalorder %s18, 1
        %s691 = scalar_select %p690, %s18, 1
        %s692 = smul.addr %s691, 8
        %s693 = scalar_lea.vmem %s4, %s692
      $region56: #{atrous_module_forward.2} parent=47 // pred_fallthru
        _
      // Predicated region
      $region57: #{atrous_module_forward.2} parent=47 // pred_check
        %p694 = pneg %p161
      $region58: #{atrous_module_forward.2} parent=47 // pred_check_branch
        %696 = sbr.rel (%p694) target = $region60
      $region59: #{atrous_module_forward.2} parent=47 // pred_region
        %p697 = scmp.lt.s32.totalorder %s18, 1
        %s698 = scalar_select %p697, %s18, 1
        %s699 = smul.addr %s698, 8
        %s700 = scalar_lea.vmem %s5, %s699
      $region60: #{atrous_module_forward.2} parent=47 // pred_fallthru
        _
    $region48: #{atrous_module_forward.2} parent=5 // pred_fallthru
      _
  $region6: #{atrous_module_forward.2} parent=0 // loop_footer
    %s16 = sadd.s32 1, %s12
  $region7: #{atrous_module_forward.2} parent=0 // loop_footer_branch
    %11 = sbr.rel target = $region3
  $region8: #{atrous_module_forward.2} parent=0 // loop_exit
    _

</llo_original>
